<compile_context>
chip_gen: v6e
topology: v6e:2x2x1
jax: 0.10.0
libtpu: 0.0.40
codegen_flags: <defaults>
</compile_context>

<pallas_src>
import functools

import numpy as np
import jax
import jax.numpy as jnp
from jax import lax
from jax.experimental import pallas as pl
from jax.experimental.pallas import tpu as pltpu


_BG = 8      # batch rows processed in lockstep per grid step (one per sublane)
_LANE = 128  # TPU lane width


def _fps_kernel(x_ref, idx_ref, mind_ref, *, hoist_x, unroll):
    # x_ref   : (C, BG, N)  VMEM block — channel-major cloud, 8 batches in lockstep
    # idx_ref : (BG, S) i32 VMEM block — selected point indices (output)
    # mind_ref: (BG, N) f32 VMEM scratch — running min-distance (streaming path only)
    C, BG, N = x_ref.shape
    S = idx_ref.shape[1]

    lane_n = lax.broadcasted_iota(jnp.int32, (BG, N), 1)  # point ids (lanes)
    lane_s = lax.broadcasted_iota(jnp.int32, (BG, S), 1)  # output slot ids

    def argmax_first(mind):
        # first (smallest-index) argmax along lanes, per sublane row
        maxv = jnp.max(mind, axis=1, keepdims=True)            # (BG, 1)
        cand = jnp.where(mind == maxv, lane_n, N)
        return jnp.min(cand, axis=1, keepdims=True)            # (BG, 1) i32

    def write_idx(k, far):
        # Direct masked store into the output block: no (BG, S) register carry,
        # no per-step select, no final full-block store.
        pltpu.store(idx_ref, jnp.broadcast_to(far, (BG, S)), mask=lane_s == k)

    if hoist_x:
        # Small cloud: keep all channels register/VMEM resident across the loop.
        xs = [x_ref[c].astype(jnp.float32) for c in range(C)]
        get = lambda c: xs[c]
    else:
        # Large cloud: stream channels from VMEM each step (vld slots are free),
        # avoiding an extra f32 copy and vreg-file spills.
        get = lambda c: x_ref[c].astype(jnp.float32)

    def dist_to(sel):
        dist = jnp.zeros((BG, N), jnp.float32)
        for c in range(C):                                     # unrolled over C
            xc = get(c)
            cc = jnp.sum(jnp.where(sel, xc, 0.0), axis=1, keepdims=True)
            d = xc - cc
            dist = dist + d * d                                # VPU only
        return dist

    # --- iteration 0 hoisted: idx[:, 0] = 0, mind = ||x - x[:, 0]||^2 --------
    idx_ref[:, 0:1] = jnp.zeros((BG, 1), jnp.int32)
    mind0 = jnp.zeros((BG, N), jnp.float32)
    for c in range(C):
        xc = get(c)
        d = xc - xc[:, 0:1]                                    # static lane slice
        mind0 = mind0 + d * d
    far0 = argmax_first(mind0)

    # --- iterations 1..S-1 ----------------------------------------------------
    if hoist_x:
        def body(k, carry):
            mind, far = carry
            write_idx(k, far)
            dist = dist_to(lane_n == far)
            mind = jnp.minimum(mind, dist)
            return mind, argmax_first(mind)

        lax.fori_loop(1, S, body, (mind0, far0), unroll=unroll)
    else:
        mind_ref[...] = mind0

        def body(k, far):
            write_idx(k, far)
            dist = dist_to(lane_n == far)
            mind = jnp.minimum(mind_ref[...], dist)
            mind_ref[...] = mind
            return argmax_first(mind)

        lax.fori_loop(1, S, body, far0, unroll=unroll)


def fps_sampler(x, num_out_points, permute=False, key=None):
    """JAX/Pallas equivalent of FPSSampler.forward.

    x: (B, C, N). Returns (y, idx): gathered points (B, C, S) and the selected
    indices (B, S). With permute=True, indices refer to the permuted cloud and
    y is gathered from it, matching the PyTorch module.
    """
    if permute:
        # torch.randperm analogue; deterministic given `key` (wrapper glue)
        n = x.shape[2]
        perm = jax.random.permutation(key, n)
        x = x[:, :, perm]

    B, C, N = x.shape
    S = int(num_out_points)

    # Pad batch to a multiple of the lockstep group.
    B_pad = ((B + _BG - 1) // _BG) * _BG
    xp = x if B_pad == B else jnp.pad(x, ((0, B_pad - B), (0, 0), (0, 0)))

    # Pad the point axis to a lane multiple with replicas of point 0: padded
    # lanes get min-distance 0 after the first iteration and (with
    # smallest-index tie-breaking) can never win the farthest-point argmax,
    # so out-of-range indices are impossible regardless of lane masking.
    N_pad = ((N + _LANE - 1) // _LANE) * _LANE
    if N_pad != N:
        xp = jnp.concatenate(
            [xp, jnp.broadcast_to(xp[:, :, :1], (B_pad, C, N_pad - N))], axis=2)

    # Channel-major so the kernel sees clean (BG, N) sublane x lane tiles.
    # TODO(synk): for repeated calls keep the cloud stored channel-major (or use
    # allow_input_fusion) to avoid this HBM round-trip transpose.
    xt = jnp.transpose(xp, (1, 0, 2))                          # (C, B_pad, N_pad)

    # --- static kernel-shape decisions ---------------------------------------
    block_in_bytes = C * _BG * N_pad * 4
    hoist_x = block_in_bytes <= 128 * 1024        # fits comfortably in vreg file
    if S <= 32 and N_pad <= 1024:
        unroll = True                              # small: full unroll
    else:
        unroll = 4                                 # partial unroll: keep co-issue

    # --- VMEM budgeting (generation-aware; inert at small shapes) ------------
    scratch_bytes = _BG * N_pad * 4
    out_bytes = _BG * max(S, _LANE) * 4
    in_buffers = 2
    single_buffer_input = block_in_bytes > (8 << 20)
    if single_buffer_input:
        # Compute per block is O(S*N) vs O(N) DMA: single-buffering the big
        # input block loses ~nothing and keeps v7x (64 MiB physical) and v5e
        # (16 MiB scoped default) inside budget.
        in_buffers = 1

    compiler_kwargs = {}
    need = in_buffers * block_in_bytes + 2 * out_bytes + scratch_bytes + (2 << 20)
    if need > (16 << 20):
        try:
            vmem_cap = pltpu.get_tpu_info().vmem_capacity_bytes
        except Exception:
            vmem_cap = 64 << 20
        compiler_kwargs["vmem_limit_bytes"] = int(min(need, vmem_cap))

    if single_buffer_input:
        in_spec = pl.BlockSpec((C, _BG, N_pad), lambda g: (0, g, 0),
                               pipeline_mode=pl.Buffered(1))
    else:
        in_spec = pl.BlockSpec((C, _BG, N_pad), lambda g: (0, g, 0))

    cost = pl.CostEstimate(
        flops=int(B_pad) * S * N_pad * (3 * C + 4),
        transcendentals=0,
        bytes_accessed=int(B_pad) * C * N_pad * 4 + int(B_pad) * S * 4,
    )

    kernel = functools.partial(_fps_kernel, hoist_x=hoist_x, unroll=unroll)

    idx = pl.pallas_call(
        kernel,
        out_shape=jax.ShapeDtypeStruct((B_pad, S), jnp.int32),
        grid_spec=pltpu.PrefetchScalarGridSpec(
            num_scalar_prefetch=0,
            grid=(B_pad // _BG,),
            in_specs=[in_spec],
            out_specs=pl.BlockSpec((_BG, S), lambda g: (g, 0)),
            scratch_shapes=[pltpu.VMEM((_BG, N_pad), jnp.float32)],
        ),
        compiler_params=pltpu.CompilerParams(
            dimension_semantics=("parallel",),  # independent batch groups
            **compiler_kwargs),
        cost_estimate=cost,
    )(xt)

    idx = idx[:B]                                              # drop batch padding
    # Gather is hoisted out of the serial loop; tiny, done in the wrapper.
    y = jnp.take_along_axis(x, idx[:, None, :], axis=2)
    return y, idx


def _fps_reference(x_np, num_out_points):
    """Plain numpy FPS (same start index / tie-breaking) for verification."""
    B, C, N = x_np.shape
    idx = np.zeros((B, num_out_points), np.int32)
    for b in range(B):
        d = np.full(N, np.inf, np.float32)
        far = 0
        for k in range(num_out_points):
            idx[b, k] = far
            cent = x_np[b, :, far:far + 1]
            dist = ((x_np[b] - cent) ** 2).sum(0)
            d = np.minimum(d, dist)
            far = int(np.argmax(d))
    return idx


def _check(x, num_out_points):
    y, idx = fps_sampler(x, num_out_points, permute=False)
    y = jax.block_until_ready(y)
    idx = jax.block_until_ready(idx)
    x_np = np.asarray(x)
    idx_ref = _fps_reference(x_np, num_out_points)
    assert np.array_equal(np.asarray(idx), idx_ref), (np.asarray(idx), idx_ref)
    y_ref = np.stack([x_np[b][:, idx_ref[b]] for b in range(x_np.shape[0])])
    assert np.allclose(np.asarray(y), y_ref, atol=1e-6)


if __name__ == "__main__":
    key = jax.random.PRNGKey(0)
    k_data, k_data2, k_perm = jax.random.split(key, 3)

    B, C, N = 2, 3, 64          # (batch, xyz channels, points)
    num_out_points = 8

    x = jax.random.normal(k_data, (B, C, N), dtype=jnp.float32)
    _check(x, num_out_points)

    # N not a multiple of 128 — exercises the point-0 lane-padding path
    x2 = jax.random.normal(k_data2, (B, C, 200), dtype=jnp.float32)
    _check(x2, num_out_points)

    # permute=True path (deterministic given the PRNG key); indices refer to
    # the permuted cloud, matching the PyTorch module which gathers from it.
    y_p, idx_p = fps_sampler(x, num_out_points, permute=True, key=k_perm)
    jax.block_until_ready(y_p)
    jax.block_until_ready(idx_p)

    print("KERNEL_OK")
</pallas_src>

<mosaic_0001>
module attributes {stable_mosaic.version = 11 : i64} {
  func.func @_fps_kernel(%arg0: i32, %arg1: memref<3x8x128xf32, #tpu.memory_space<vmem>>, %arg2: memref<8x8xi32, #tpu.memory_space<vmem>>, %arg3: memref<8x128xf32, #tpu.memory_space<vmem>>) attributes {dimension_semantics = [#tpu.dimension_semantics<parallel>], iteration_bounds = array<i64: 1>, scalar_prefetch = 0 : i64, scratch_operands = 1 : i64, tpu.core_type = #tpu.core_type<tc>, window_params = [{transform_indices = @transform_0, window_bounds = array<i64: 3, 8, 128>}, {transform_indices = @transform_1, window_bounds = array<i64: 8, 8>}]} {
    %0 = tpu.iota {dimensions = array<i32: 1>} : vector<8x128xi32>
    %1 = tpu.iota {dimensions = array<i32: 1>} : vector<8x8xi32>
    %c0 = arith.constant 0 : index
    %c0_0 = arith.constant 0 : index
    %c0_1 = arith.constant 0 : index
    %2 = vector.load %arg1[%c0, %c0_0, %c0_1] : memref<3x8x128xf32, #tpu.memory_space<vmem>>, vector<1x8x128xf32>
    %3 = vector.shape_cast %2 : vector<1x8x128xf32> to vector<8x128xf32>
    %c1 = arith.constant 1 : index
    %c0_2 = arith.constant 0 : index
    %c0_3 = arith.constant 0 : index
    %4 = vector.load %arg1[%c1, %c0_2, %c0_3] : memref<3x8x128xf32, #tpu.memory_space<vmem>>, vector<1x8x128xf32>
    %5 = vector.shape_cast %4 : vector<1x8x128xf32> to vector<8x128xf32>
    %c2 = arith.constant 2 : index
    %c0_4 = arith.constant 0 : index
    %c0_5 = arith.constant 0 : index
    %6 = vector.load %arg1[%c2, %c0_4, %c0_5] : memref<3x8x128xf32, #tpu.memory_space<vmem>>, vector<1x8x128xf32>
    %7 = vector.shape_cast %6 : vector<1x8x128xf32> to vector<8x128xf32>
    %c0_i32 = arith.constant 0 : i32
    %8 = vector.broadcast %c0_i32 : i32 to vector<8x1xi32>
    %c0_6 = arith.constant 0 : index
    %c0_7 = arith.constant 0 : index
    %9 = vector.load %arg2[%c0_6, %c0_7] : memref<8x8xi32, #tpu.memory_space<vmem>>, vector<8x1xi32>
    tpu.vector_store %arg2[%c0_6, %c0_7], %8 {strides = array<i32>} : memref<8x8xi32, #tpu.memory_space<vmem>>, vector<8x1xi32>,
    %cst = arith.constant 0.000000e+00 : f32
    %10 = vector.broadcast %cst : f32 to vector<8x128xf32>
    %11 = vector.extract_strided_slice %3 {offsets = [0, 0], sizes = [8, 1], strides = [1, 1]} : vector<8x128xf32> to vector<8x1xf32>
    %12 = vector.broadcast %11 : vector<8x1xf32> to vector<8x128xf32>
    %13 = arith.subf %3, %12 : vector<8x128xf32>
    %14 = arith.mulf %13, %13 : vector<8x128xf32>
    %15 = arith.addf %10, %14 : vector<8x128xf32>
    %16 = vector.extract_strided_slice %5 {offsets = [0, 0], sizes = [8, 1], strides = [1, 1]} : vector<8x128xf32> to vector<8x1xf32>
    %17 = vector.broadcast %16 : vector<8x1xf32> to vector<8x128xf32>
    %18 = arith.subf %5, %17 : vector<8x128xf32>
    %19 = arith.mulf %18, %18 : vector<8x128xf32>
    %20 = arith.addf %15, %19 : vector<8x128xf32>
    %21 = vector.extract_strided_slice %7 {offsets = [0, 0], sizes = [8, 1], strides = [1, 1]} : vector<8x128xf32> to vector<8x1xf32>
    %22 = vector.broadcast %21 : vector<8x1xf32> to vector<8x128xf32>
    %23 = arith.subf %7, %22 : vector<8x128xf32>
    %24 = arith.mulf %23, %23 : vector<8x128xf32>
    %25 = arith.addf %20, %24 : vector<8x128xf32>
    %cst_8 = arith.constant dense<0xFF800000> : vector<8xf32>
    %26 = vector.multi_reduction <maximumf>, %25, %cst_8 [1] : vector<8x128xf32> to vector<8xf32>
    %27 = vector.shape_cast %26 : vector<8xf32> to vector<8x1xf32>
    %28 = vector.broadcast %27 : vector<8x1xf32> to vector<8x128xf32>
    %29 = arith.cmpf oeq, %25, %28 : vector<8x128xf32>
    %c128_i32 = arith.constant 128 : i32
    %30 = vector.broadcast %c128_i32 : i32 to vector<8x128xi32>
    %31 = arith.select %29, %0, %30 : vector<8x128xi1>, vector<8x128xi32>
    %cst_9 = arith.constant dense<2147483647> : vector<8xi32>
    %32 = vector.multi_reduction <minsi>, %31, %cst_9 [1] : vector<8x128xi32> to vector<8xi32>
    %33 = vector.shape_cast %32 : vector<8xi32> to vector<8x1xi32>
    %c1_i32 = arith.constant 1 : i32
    %34 = vector.shape_cast %33 : vector<8x1xi32> to vector<8x1xi32>
    %35 = vector.broadcast %34 : vector<8x1xi32> to vector<8x8xi32>
    %36 = vector.broadcast %c1_i32 : i32 to vector<8x8xi32>
    %37 = arith.cmpi eq, %1, %36 : vector<8x8xi32>
    %c0_10 = arith.constant 0 : index
    %c0_11 = arith.constant 0 : index
    %38 = vector.load %arg2[%c0_10, %c0_11] : memref<8x8xi32, #tpu.memory_space<vmem>>, vector<8x8xi32>
    tpu.vector_store %arg2[%c0_10, %c0_11], %35 masked %37 {strides = array<i32>} : memref<8x8xi32, #tpu.memory_space<vmem>>, vector<8x8xi32>, vector<8x8xi1>
    %39 = vector.broadcast %33 : vector<8x1xi32> to vector<8x128xi32>
    %40 = arith.cmpi eq, %0, %39 : vector<8x128xi32>
    %cst_12 = arith.constant 0.000000e+00 : f32
    %41 = vector.broadcast %cst_12 : f32 to vector<8x128xf32>
    %cst_13 = arith.constant 0.000000e+00 : f32
    %42 = vector.broadcast %cst_13 : f32 to vector<8x128xf32>
    %43 = arith.select %40, %3, %42 : vector<8x128xi1>, vector<8x128xf32>
    %cst_14 = arith.constant dense<0.000000e+00> : vector<8xf32>
    %44 = vector.multi_reduction <add>, %43, %cst_14 [1] : vector<8x128xf32> to vector<8xf32>
    %45 = vector.shape_cast %44 : vector<8xf32> to vector<8x1xf32>
    %46 = vector.broadcast %45 : vector<8x1xf32> to vector<8x128xf32>
    %47 = arith.subf %3, %46 : vector<8x128xf32>
    %48 = arith.mulf %47, %47 : vector<8x128xf32>
    %49 = arith.addf %41, %48 : vector<8x128xf32>
    %cst_15 = arith.constant 0.000000e+00 : f32
    %50 = vector.broadcast %cst_15 : f32 to vector<8x128xf32>
    %51 = arith.select %40, %5, %50 : vector<8x128xi1>, vector<8x128xf32>
    %cst_16 = arith.constant dense<0.000000e+00> : vector<8xf32>
    %52 = vector.multi_reduction <add>, %51, %cst_16 [1] : vector<8x128xf32> to vector<8xf32>
    %53 = vector.shape_cast %52 : vector<8xf32> to vector<8x1xf32>
    %54 = vector.broadcast %53 : vector<8x1xf32> to vector<8x128xf32>
    %55 = arith.subf %5, %54 : vector<8x128xf32>
    %56 = arith.mulf %55, %55 : vector<8x128xf32>
    %57 = arith.addf %49, %56 : vector<8x128xf32>
    %cst_17 = arith.constant 0.000000e+00 : f32
    %58 = vector.broadcast %cst_17 : f32 to vector<8x128xf32>
    %59 = arith.select %40, %7, %58 : vector<8x128xi1>, vector<8x128xf32>
    %cst_18 = arith.constant dense<0.000000e+00> : vector<8xf32>
    %60 = vector.multi_reduction <add>, %59, %cst_18 [1] : vector<8x128xf32> to vector<8xf32>
    %61 = vector.shape_cast %60 : vector<8xf32> to vector<8x1xf32>
    %62 = vector.broadcast %61 : vector<8x1xf32> to vector<8x128xf32>
    %63 = arith.subf %7, %62 : vector<8x128xf32>
    %64 = arith.mulf %63, %63 : vector<8x128xf32>
    %65 = arith.addf %57, %64 : vector<8x128xf32>
    %66 = arith.minimumf %25, %65 : vector<8x128xf32>
    %cst_19 = arith.constant dense<0xFF800000> : vector<8xf32>
    %67 = vector.multi_reduction <maximumf>, %66, %cst_19 [1] : vector<8x128xf32> to vector<8xf32>
    %68 = vector.shape_cast %67 : vector<8xf32> to vector<8x1xf32>
    %69 = vector.broadcast %68 : vector<8x1xf32> to vector<8x128xf32>
    %70 = arith.cmpf oeq, %66, %69 : vector<8x128xf32>
    %c128_i32_20 = arith.constant 128 : i32
    %71 = vector.broadcast %c128_i32_20 : i32 to vector<8x128xi32>
    %72 = arith.select %70, %0, %71 : vector<8x128xi1>, vector<8x128xi32>
    %cst_21 = arith.constant dense<2147483647> : vector<8xi32>
    %73 = vector.multi_reduction <minsi>, %72, %cst_21 [1] : vector<8x128xi32> to vector<8xi32>
    %74 = vector.shape_cast %73 : vector<8xi32> to vector<8x1xi32>
    %c2_i32 = arith.constant 2 : i32
    %75 = vector.shape_cast %74 : vector<8x1xi32> to vector<8x1xi32>
    %76 = vector.broadcast %75 : vector<8x1xi32> to vector<8x8xi32>
    %77 = vector.broadcast %c2_i32 : i32 to vector<8x8xi32>
    %78 = arith.cmpi eq, %1, %77 : vector<8x8xi32>
    %c0_22 = arith.constant 0 : index
    %c0_23 = arith.constant 0 : index
    %79 = vector.load %arg2[%c0_22, %c0_23] : memref<8x8xi32, #tpu.memory_space<vmem>>, vector<8x8xi32>
    tpu.vector_store %arg2[%c0_22, %c0_23], %76 masked %78 {strides = array<i32>} : memref<8x8xi32, #tpu.memory_space<vmem>>, vector<8x8xi32>, vector<8x8xi1>
    %80 = vector.broadcast %74 : vector<8x1xi32> to vector<8x128xi32>
    %81 = arith.cmpi eq, %0, %80 : vector<8x128xi32>
    %cst_24 = arith.constant 0.000000e+00 : f32
    %82 = vector.broadcast %cst_24 : f32 to vector<8x128xf32>
    %cst_25 = arith.constant 0.000000e+00 : f32
    %83 = vector.broadcast %cst_25 : f32 to vector<8x128xf32>
    %84 = arith.select %81, %3, %83 : vector<8x128xi1>, vector<8x128xf32>
    %cst_26 = arith.constant dense<0.000000e+00> : vector<8xf32>
    %85 = vector.multi_reduction <add>, %84, %cst_26 [1] : vector<8x128xf32> to vector<8xf32>
    %86 = vector.shape_cast %85 : vector<8xf32> to vector<8x1xf32>
    %87 = vector.broadcast %86 : vector<8x1xf32> to vector<8x128xf32>
    %88 = arith.subf %3, %87 : vector<8x128xf32>
    %89 = arith.mulf %88, %88 : vector<8x128xf32>
    %90 = arith.addf %82, %89 : vector<8x128xf32>
    %cst_27 = arith.constant 0.000000e+00 : f32
    %91 = vector.broadcast %cst_27 : f32 to vector<8x128xf32>
    %92 = arith.select %81, %5, %91 : vector<8x128xi1>, vector<8x128xf32>
    %cst_28 = arith.constant dense<0.000000e+00> : vector<8xf32>
    %93 = vector.multi_reduction <add>, %92, %cst_28 [1] : vector<8x128xf32> to vector<8xf32>
    %94 = vector.shape_cast %93 : vector<8xf32> to vector<8x1xf32>
    %95 = vector.broadcast %94 : vector<8x1xf32> to vector<8x128xf32>
    %96 = arith.subf %5, %95 : vector<8x128xf32>
    %97 = arith.mulf %96, %96 : vector<8x128xf32>
    %98 = arith.addf %90, %97 : vector<8x128xf32>
    %cst_29 = arith.constant 0.000000e+00 : f32
    %99 = vector.broadcast %cst_29 : f32 to vector<8x128xf32>
    %100 = arith.select %81, %7, %99 : vector<8x128xi1>, vector<8x128xf32>
    %cst_30 = arith.constant dense<0.000000e+00> : vector<8xf32>
    %101 = vector.multi_reduction <add>, %100, %cst_30 [1] : vector<8x128xf32> to vector<8xf32>
    %102 = vector.shape_cast %101 : vector<8xf32> to vector<8x1xf32>
    %103 = vector.broadcast %102 : vector<8x1xf32> to vector<8x128xf32>
    %104 = arith.subf %7, %103 : vector<8x128xf32>
    %105 = arith.mulf %104, %104 : vector<8x128xf32>
    %106 = arith.addf %98, %105 : vector<8x128xf32>
    %107 = arith.minimumf %66, %106 : vector<8x128xf32>
    %cst_31 = arith.constant dense<0xFF800000> : vector<8xf32>
    %108 = vector.multi_reduction <maximumf>, %107, %cst_31 [1] : vector<8x128xf32> to vector<8xf32>
    %109 = vector.shape_cast %108 : vector<8xf32> to vector<8x1xf32>
    %110 = vector.broadcast %109 : vector<8x1xf32> to vector<8x128xf32>
    %111 = arith.cmpf oeq, %107, %110 : vector<8x128xf32>
    %c128_i32_32 = arith.constant 128 : i32
    %112 = vector.broadcast %c128_i32_32 : i32 to vector<8x128xi32>
    %113 = arith.select %111, %0, %112 : vector<8x128xi1>, vector<8x128xi32>
    %cst_33 = arith.constant dense<2147483647> : vector<8xi32>
    %114 = vector.multi_reduction <minsi>, %113, %cst_33 [1] : vector<8x128xi32> to vector<8xi32>
    %115 = vector.shape_cast %114 : vector<8xi32> to vector<8x1xi32>
    %c3_i32 = arith.constant 3 : i32
    %116 = vector.shape_cast %115 : vector<8x1xi32> to vector<8x1xi32>
    %117 = vector.broadcast %116 : vector<8x1xi32> to vector<8x8xi32>
    %118 = vector.broadcast %c3_i32 : i32 to vector<8x8xi32>
    %119 = arith.cmpi eq, %1, %118 : vector<8x8xi32>
    %c0_34 = arith.constant 0 : index
    %c0_35 = arith.constant 0 : index
    %120 = vector.load %arg2[%c0_34, %c0_35] : memref<8x8xi32, #tpu.memory_space<vmem>>, vector<8x8xi32>
    tpu.vector_store %arg2[%c0_34, %c0_35], %117 masked %119 {strides = array<i32>} : memref<8x8xi32, #tpu.memory_space<vmem>>, vector<8x8xi32>, vector<8x8xi1>
    %121 = vector.broadcast %115 : vector<8x1xi32> to vector<8x128xi32>
    %122 = arith.cmpi eq, %0, %121 : vector<8x128xi32>
    %cst_36 = arith.constant 0.000000e+00 : f32
    %123 = vector.broadcast %cst_36 : f32 to vector<8x128xf32>
    %cst_37 = arith.constant 0.000000e+00 : f32
    %124 = vector.broadcast %cst_37 : f32 to vector<8x128xf32>
    %125 = arith.select %122, %3, %124 : vector<8x128xi1>, vector<8x128xf32>
    %cst_38 = arith.constant dense<0.000000e+00> : vector<8xf32>
    %126 = vector.multi_reduction <add>, %125, %cst_38 [1] : vector<8x128xf32> to vector<8xf32>
    %127 = vector.shape_cast %126 : vector<8xf32> to vector<8x1xf32>
    %128 = vector.broadcast %127 : vector<8x1xf32> to vector<8x128xf32>
    %129 = arith.subf %3, %128 : vector<8x128xf32>
    %130 = arith.mulf %129, %129 : vector<8x128xf32>
    %131 = arith.addf %123, %130 : vector<8x128xf32>
    %cst_39 = arith.constant 0.000000e+00 : f32
    %132 = vector.broadcast %cst_39 : f32 to vector<8x128xf32>
    %133 = arith.select %122, %5, %132 : vector<8x128xi1>, vector<8x128xf32>
    %cst_40 = arith.constant dense<0.000000e+00> : vector<8xf32>
    %134 = vector.multi_reduction <add>, %133, %cst_40 [1] : vector<8x128xf32> to vector<8xf32>
    %135 = vector.shape_cast %134 : vector<8xf32> to vector<8x1xf32>
    %136 = vector.broadcast %135 : vector<8x1xf32> to vector<8x128xf32>
    %137 = arith.subf %5, %136 : vector<8x128xf32>
    %138 = arith.mulf %137, %137 : vector<8x128xf32>
    %139 = arith.addf %131, %138 : vector<8x128xf32>
    %cst_41 = arith.constant 0.000000e+00 : f32
    %140 = vector.broadcast %cst_41 : f32 to vector<8x128xf32>
    %141 = arith.select %122, %7, %140 : vector<8x128xi1>, vector<8x128xf32>
    %cst_42 = arith.constant dense<0.000000e+00> : vector<8xf32>
    %142 = vector.multi_reduction <add>, %141, %cst_42 [1] : vector<8x128xf32> to vector<8xf32>
    %143 = vector.shape_cast %142 : vector<8xf32> to vector<8x1xf32>
    %144 = vector.broadcast %143 : vector<8x1xf32> to vector<8x128xf32>
    %145 = arith.subf %7, %144 : vector<8x128xf32>
    %146 = arith.mulf %145, %145 : vector<8x128xf32>
    %147 = arith.addf %139, %146 : vector<8x128xf32>
    %148 = arith.minimumf %107, %147 : vector<8x128xf32>
    %cst_43 = arith.constant dense<0xFF800000> : vector<8xf32>
    %149 = vector.multi_reduction <maximumf>, %148, %cst_43 [1] : vector<8x128xf32> to vector<8xf32>
    %150 = vector.shape_cast %149 : vector<8xf32> to vector<8x1xf32>
    %151 = vector.broadcast %150 : vector<8x1xf32> to vector<8x128xf32>
    %152 = arith.cmpf oeq, %148, %151 : vector<8x128xf32>
    %c128_i32_44 = arith.constant 128 : i32
    %153 = vector.broadcast %c128_i32_44 : i32 to vector<8x128xi32>
    %154 = arith.select %152, %0, %153 : vector<8x128xi1>, vector<8x128xi32>
    %cst_45 = arith.constant dense<2147483647> : vector<8xi32>
    %155 = vector.multi_reduction <minsi>, %154, %cst_45 [1] : vector<8x128xi32> to vector<8xi32>
    %156 = vector.shape_cast %155 : vector<8xi32> to vector<8x1xi32>
    %c4_i32 = arith.constant 4 : i32
    %157 = vector.shape_cast %156 : vector<8x1xi32> to vector<8x1xi32>
    %158 = vector.broadcast %157 : vector<8x1xi32> to vector<8x8xi32>
    %159 = vector.broadcast %c4_i32 : i32 to vector<8x8xi32>
    %160 = arith.cmpi eq, %1, %159 : vector<8x8xi32>
    %c0_46 = arith.constant 0 : index
    %c0_47 = arith.constant 0 : index
    %161 = vector.load %arg2[%c0_46, %c0_47] : memref<8x8xi32, #tpu.memory_space<vmem>>, vector<8x8xi32>
    tpu.vector_store %arg2[%c0_46, %c0_47], %158 masked %160 {strides = array<i32>} : memref<8x8xi32, #tpu.memory_space<vmem>>, vector<8x8xi32>, vector<8x8xi1>
    %162 = vector.broadcast %156 : vector<8x1xi32> to vector<8x128xi32>
    %163 = arith.cmpi eq, %0, %162 : vector<8x128xi32>
    %cst_48 = arith.constant 0.000000e+00 : f32
    %164 = vector.broadcast %cst_48 : f32 to vector<8x128xf32>
    %cst_49 = arith.constant 0.000000e+00 : f32
    %165 = vector.broadcast %cst_49 : f32 to vector<8x128xf32>
    %166 = arith.select %163, %3, %165 : vector<8x128xi1>, vector<8x128xf32>
    %cst_50 = arith.constant dense<0.000000e+00> : vector<8xf32>
    %167 = vector.multi_reduction <add>, %166, %cst_50 [1] : vector<8x128xf32> to vector<8xf32>
    %168 = vector.shape_cast %167 : vector<8xf32> to vector<8x1xf32>
    %169 = vector.broadcast %168 : vector<8x1xf32> to vector<8x128xf32>
    %170 = arith.subf %3, %169 : vector<8x128xf32>
    %171 = arith.mulf %170, %170 : vector<8x128xf32>
    %172 = arith.addf %164, %171 : vector<8x128xf32>
    %cst_51 = arith.constant 0.000000e+00 : f32
    %173 = vector.broadcast %cst_51 : f32 to vector<8x128xf32>
    %174 = arith.select %163, %5, %173 : vector<8x128xi1>, vector<8x128xf32>
    %cst_52 = arith.constant dense<0.000000e+00> : vector<8xf32>
    %175 = vector.multi_reduction <add>, %174, %cst_52 [1] : vector<8x128xf32> to vector<8xf32>
    %176 = vector.shape_cast %175 : vector<8xf32> to vector<8x1xf32>
    %177 = vector.broadcast %176 : vector<8x1xf32> to vector<8x128xf32>
    %178 = arith.subf %5, %177 : vector<8x128xf32>
    %179 = arith.mulf %178, %178 : vector<8x128xf32>
    %180 = arith.addf %172, %179 : vector<8x128xf32>
    %cst_53 = arith.constant 0.000000e+00 : f32
    %181 = vector.broadcast %cst_53 : f32 to vector<8x128xf32>
    %182 = arith.select %163, %7, %181 : vector<8x128xi1>, vector<8x128xf32>
    %cst_54 = arith.constant dense<0.000000e+00> : vector<8xf32>
    %183 = vector.multi_reduction <add>, %182, %cst_54 [1] : vector<8x128xf32> to vector<8xf32>
    %184 = vector.shape_cast %183 : vector<8xf32> to vector<8x1xf32>
    %185 = vector.broadcast %184 : vector<8x1xf32> to vector<8x128xf32>
    %186 = arith.subf %7, %185 : vector<8x128xf32>
    %187 = arith.mulf %186, %186 : vector<8x128xf32>
    %188 = arith.addf %180, %187 : vector<8x128xf32>
    %189 = arith.minimumf %148, %188 : vector<8x128xf32>
    %cst_55 = arith.constant dense<0xFF800000> : vector<8xf32>
    %190 = vector.multi_reduction <maximumf>, %189, %cst_55 [1] : vector<8x128xf32> to vector<8xf32>
    %191 = vector.shape_cast %190 : vector<8xf32> to vector<8x1xf32>
    %192 = vector.broadcast %191 : vector<8x1xf32> to vector<8x128xf32>
    %193 = arith.cmpf oeq, %189, %192 : vector<8x128xf32>
    %c128_i32_56 = arith.constant 128 : i32
    %194 = vector.broadcast %c128_i32_56 : i32 to vector<8x128xi32>
    %195 = arith.select %193, %0, %194 : vector<8x128xi1>, vector<8x128xi32>
    %cst_57 = arith.constant dense<2147483647> : vector<8xi32>
    %196 = vector.multi_reduction <minsi>, %195, %cst_57 [1] : vector<8x128xi32> to vector<8xi32>
    %197 = vector.shape_cast %196 : vector<8xi32> to vector<8x1xi32>
    %c5_i32 = arith.constant 5 : i32
    %198 = vector.shape_cast %197 : vector<8x1xi32> to vector<8x1xi32>
    %199 = vector.broadcast %198 : vector<8x1xi32> to vector<8x8xi32>
    %200 = vector.broadcast %c5_i32 : i32 to vector<8x8xi32>
    %201 = arith.cmpi eq, %1, %200 : vector<8x8xi32>
    %c0_58 = arith.constant 0 : index
    %c0_59 = arith.constant 0 : index
    %202 = vector.load %arg2[%c0_58, %c0_59] : memref<8x8xi32, #tpu.memory_space<vmem>>, vector<8x8xi32>
    tpu.vector_store %arg2[%c0_58, %c0_59], %199 masked %201 {strides = array<i32>} : memref<8x8xi32, #tpu.memory_space<vmem>>, vector<8x8xi32>, vector<8x8xi1>
    %203 = vector.broadcast %197 : vector<8x1xi32> to vector<8x128xi32>
    %204 = arith.cmpi eq, %0, %203 : vector<8x128xi32>
    %cst_60 = arith.constant 0.000000e+00 : f32
    %205 = vector.broadcast %cst_60 : f32 to vector<8x128xf32>
    %cst_61 = arith.constant 0.000000e+00 : f32
    %206 = vector.broadcast %cst_61 : f32 to vector<8x128xf32>
    %207 = arith.select %204, %3, %206 : vector<8x128xi1>, vector<8x128xf32>
    %cst_62 = arith.constant dense<0.000000e+00> : vector<8xf32>
    %208 = vector.multi_reduction <add>, %207, %cst_62 [1] : vector<8x128xf32> to vector<8xf32>
    %209 = vector.shape_cast %208 : vector<8xf32> to vector<8x1xf32>
    %210 = vector.broadcast %209 : vector<8x1xf32> to vector<8x128xf32>
    %211 = arith.subf %3, %210 : vector<8x128xf32>
    %212 = arith.mulf %211, %211 : vector<8x128xf32>
    %213 = arith.addf %205, %212 : vector<8x128xf32>
    %cst_63 = arith.constant 0.000000e+00 : f32
    %214 = vector.broadcast %cst_63 : f32 to vector<8x128xf32>
    %215 = arith.select %204, %5, %214 : vector<8x128xi1>, vector<8x128xf32>
    %cst_64 = arith.constant dense<0.000000e+00> : vector<8xf32>
    %216 = vector.multi_reduction <add>, %215, %cst_64 [1] : vector<8x128xf32> to vector<8xf32>
    %217 = vector.shape_cast %216 : vector<8xf32> to vector<8x1xf32>
    %218 = vector.broadcast %217 : vector<8x1xf32> to vector<8x128xf32>
    %219 = arith.subf %5, %218 : vector<8x128xf32>
    %220 = arith.mulf %219, %219 : vector<8x128xf32>
    %221 = arith.addf %213, %220 : vector<8x128xf32>
    %cst_65 = arith.constant 0.000000e+00 : f32
    %222 = vector.broadcast %cst_65 : f32 to vector<8x128xf32>
    %223 = arith.select %204, %7, %222 : vector<8x128xi1>, vector<8x128xf32>
    %cst_66 = arith.constant dense<0.000000e+00> : vector<8xf32>
    %224 = vector.multi_reduction <add>, %223, %cst_66 [1] : vector<8x128xf32> to vector<8xf32>
    %225 = vector.shape_cast %224 : vector<8xf32> to vector<8x1xf32>
    %226 = vector.broadcast %225 : vector<8x1xf32> to vector<8x128xf32>
    %227 = arith.subf %7, %226 : vector<8x128xf32>
    %228 = arith.mulf %227, %227 : vector<8x128xf32>
    %229 = arith.addf %221, %228 : vector<8x128xf32>
    %230 = arith.minimumf %189, %229 : vector<8x128xf32>
    %cst_67 = arith.constant dense<0xFF800000> : vector<8xf32>
    %231 = vector.multi_reduction <maximumf>, %230, %cst_67 [1] : vector<8x128xf32> to vector<8xf32>
    %232 = vector.shape_cast %231 : vector<8xf32> to vector<8x1xf32>
    %233 = vector.broadcast %232 : vector<8x1xf32> to vector<8x128xf32>
    %234 = arith.cmpf oeq, %230, %233 : vector<8x128xf32>
    %c128_i32_68 = arith.constant 128 : i32
    %235 = vector.broadcast %c128_i32_68 : i32 to vector<8x128xi32>
    %236 = arith.select %234, %0, %235 : vector<8x128xi1>, vector<8x128xi32>
    %cst_69 = arith.constant dense<2147483647> : vector<8xi32>
    %237 = vector.multi_reduction <minsi>, %236, %cst_69 [1] : vector<8x128xi32> to vector<8xi32>
    %238 = vector.shape_cast %237 : vector<8xi32> to vector<8x1xi32>
    %c6_i32 = arith.constant 6 : i32
    %239 = vector.shape_cast %238 : vector<8x1xi32> to vector<8x1xi32>
    %240 = vector.broadcast %239 : vector<8x1xi32> to vector<8x8xi32>
    %241 = vector.broadcast %c6_i32 : i32 to vector<8x8xi32>
    %242 = arith.cmpi eq, %1, %241 : vector<8x8xi32>
    %c0_70 = arith.constant 0 : index
    %c0_71 = arith.constant 0 : index
    %243 = vector.load %arg2[%c0_70, %c0_71] : memref<8x8xi32, #tpu.memory_space<vmem>>, vector<8x8xi32>
    tpu.vector_store %arg2[%c0_70, %c0_71], %240 masked %242 {strides = array<i32>} : memref<8x8xi32, #tpu.memory_space<vmem>>, vector<8x8xi32>, vector<8x8xi1>
    %244 = vector.broadcast %238 : vector<8x1xi32> to vector<8x128xi32>
    %245 = arith.cmpi eq, %0, %244 : vector<8x128xi32>
    %cst_72 = arith.constant 0.000000e+00 : f32
    %246 = vector.broadcast %cst_72 : f32 to vector<8x128xf32>
    %cst_73 = arith.constant 0.000000e+00 : f32
    %247 = vector.broadcast %cst_73 : f32 to vector<8x128xf32>
    %248 = arith.select %245, %3, %247 : vector<8x128xi1>, vector<8x128xf32>
    %cst_74 = arith.constant dense<0.000000e+00> : vector<8xf32>
    %249 = vector.multi_reduction <add>, %248, %cst_74 [1] : vector<8x128xf32> to vector<8xf32>
    %250 = vector.shape_cast %249 : vector<8xf32> to vector<8x1xf32>
    %251 = vector.broadcast %250 : vector<8x1xf32> to vector<8x128xf32>
    %252 = arith.subf %3, %251 : vector<8x128xf32>
    %253 = arith.mulf %252, %252 : vector<8x128xf32>
    %254 = arith.addf %246, %253 : vector<8x128xf32>
    %cst_75 = arith.constant 0.000000e+00 : f32
    %255 = vector.broadcast %cst_75 : f32 to vector<8x128xf32>
    %256 = arith.select %245, %5, %255 : vector<8x128xi1>, vector<8x128xf32>
    %cst_76 = arith.constant dense<0.000000e+00> : vector<8xf32>
    %257 = vector.multi_reduction <add>, %256, %cst_76 [1] : vector<8x128xf32> to vector<8xf32>
    %258 = vector.shape_cast %257 : vector<8xf32> to vector<8x1xf32>
    %259 = vector.broadcast %258 : vector<8x1xf32> to vector<8x128xf32>
    %260 = arith.subf %5, %259 : vector<8x128xf32>
    %261 = arith.mulf %260, %260 : vector<8x128xf32>
    %262 = arith.addf %254, %261 : vector<8x128xf32>
    %cst_77 = arith.constant 0.000000e+00 : f32
    %263 = vector.broadcast %cst_77 : f32 to vector<8x128xf32>
    %264 = arith.select %245, %7, %263 : vector<8x128xi1>, vector<8x128xf32>
    %cst_78 = arith.constant dense<0.000000e+00> : vector<8xf32>
    %265 = vector.multi_reduction <add>, %264, %cst_78 [1] : vector<8x128xf32> to vector<8xf32>
    %266 = vector.shape_cast %265 : vector<8xf32> to vector<8x1xf32>
    %267 = vector.broadcast %266 : vector<8x1xf32> to vector<8x128xf32>
    %268 = arith.subf %7, %267 : vector<8x128xf32>
    %269 = arith.mulf %268, %268 : vector<8x128xf32>
    %270 = arith.addf %262, %269 : vector<8x128xf32>
    %271 = arith.minimumf %230, %270 : vector<8x128xf32>
    %cst_79 = arith.constant dense<0xFF800000> : vector<8xf32>
    %272 = vector.multi_reduction <maximumf>, %271, %cst_79 [1] : vector<8x128xf32> to vector<8xf32>
    %273 = vector.shape_cast %272 : vector<8xf32> to vector<8x1xf32>
    %274 = vector.broadcast %273 : vector<8x1xf32> to vector<8x128xf32>
    %275 = arith.cmpf oeq, %271, %274 : vector<8x128xf32>
    %c128_i32_80 = arith.constant 128 : i32
    %276 = vector.broadcast %c128_i32_80 : i32 to vector<8x128xi32>
    %277 = arith.select %275, %0, %276 : vector<8x128xi1>, vector<8x128xi32>
    %cst_81 = arith.constant dense<2147483647> : vector<8xi32>
    %278 = vector.multi_reduction <minsi>, %277, %cst_81 [1] : vector<8x128xi32> to vector<8xi32>
    %279 = vector.shape_cast %278 : vector<8xi32> to vector<8x1xi32>
    %c7_i32 = arith.constant 7 : i32
    %280 = vector.shape_cast %279 : vector<8x1xi32> to vector<8x1xi32>
    %281 = vector.broadcast %280 : vector<8x1xi32> to vector<8x8xi32>
    %282 = vector.broadcast %c7_i32 : i32 to vector<8x8xi32>
    %283 = arith.cmpi eq, %1, %282 : vector<8x8xi32>
    %c0_82 = arith.constant 0 : index
    %c0_83 = arith.constant 0 : index
    %284 = vector.load %arg2[%c0_82, %c0_83] : memref<8x8xi32, #tpu.memory_space<vmem>>, vector<8x8xi32>
    tpu.vector_store %arg2[%c0_82, %c0_83], %281 masked %283 {strides = array<i32>} : memref<8x8xi32, #tpu.memory_space<vmem>>, vector<8x8xi32>, vector<8x8xi1>
    %285 = vector.broadcast %279 : vector<8x1xi32> to vector<8x128xi32>
    %286 = arith.cmpi eq, %0, %285 : vector<8x128xi32>
    %cst_84 = arith.constant 0.000000e+00 : f32
    %287 = vector.broadcast %cst_84 : f32 to vector<8x128xf32>
    %cst_85 = arith.constant 0.000000e+00 : f32
    %288 = vector.broadcast %cst_85 : f32 to vector<8x128xf32>
    %289 = arith.select %286, %3, %288 : vector<8x128xi1>, vector<8x128xf32>
    %cst_86 = arith.constant dense<0.000000e+00> : vector<8xf32>
    %290 = vector.multi_reduction <add>, %289, %cst_86 [1] : vector<8x128xf32> to vector<8xf32>
    %291 = vector.shape_cast %290 : vector<8xf32> to vector<8x1xf32>
    %292 = vector.broadcast %291 : vector<8x1xf32> to vector<8x128xf32>
    %293 = arith.subf %3, %292 : vector<8x128xf32>
    %294 = arith.mulf %293, %293 : vector<8x128xf32>
    %295 = arith.addf %287, %294 : vector<8x128xf32>
    %cst_87 = arith.constant 0.000000e+00 : f32
    %296 = vector.broadcast %cst_87 : f32 to vector<8x128xf32>
    %297 = arith.select %286, %5, %296 : vector<8x128xi1>, vector<8x128xf32>
    %cst_88 = arith.constant dense<0.000000e+00> : vector<8xf32>
    %298 = vector.multi_reduction <add>, %297, %cst_88 [1] : vector<8x128xf32> to vector<8xf32>
    %299 = vector.shape_cast %298 : vector<8xf32> to vector<8x1xf32>
    %300 = vector.broadcast %299 : vector<8x1xf32> to vector<8x128xf32>
    %301 = arith.subf %5, %300 : vector<8x128xf32>
    %302 = arith.mulf %301, %301 : vector<8x128xf32>
    %303 = arith.addf %295, %302 : vector<8x128xf32>
    %cst_89 = arith.constant 0.000000e+00 : f32
    %304 = vector.broadcast %cst_89 : f32 to vector<8x128xf32>
    %305 = arith.select %286, %7, %304 : vector<8x128xi1>, vector<8x128xf32>
    %cst_90 = arith.constant dense<0.000000e+00> : vector<8xf32>
    %306 = vector.multi_reduction <add>, %305, %cst_90 [1] : vector<8x128xf32> to vector<8xf32>
    %307 = vector.shape_cast %306 : vector<8xf32> to vector<8x1xf32>
    %308 = vector.broadcast %307 : vector<8x1xf32> to vector<8x128xf32>
    %309 = arith.subf %7, %308 : vector<8x128xf32>
    %310 = arith.mulf %309, %309 : vector<8x128xf32>
    %311 = arith.addf %303, %310 : vector<8x128xf32>
    %312 = arith.minimumf %271, %311 : vector<8x128xf32>
    %cst_91 = arith.constant dense<0xFF800000> : vector<8xf32>
    %313 = vector.multi_reduction <maximumf>, %312, %cst_91 [1] : vector<8x128xf32> to vector<8xf32>
    %314 = vector.shape_cast %313 : vector<8xf32> to vector<8x1xf32>
    %315 = vector.broadcast %314 : vector<8x1xf32> to vector<8x128xf32>
    %316 = arith.cmpf oeq, %312, %315 : vector<8x128xf32>
    %c128_i32_92 = arith.constant 128 : i32
    %317 = vector.broadcast %c128_i32_92 : i32 to vector<8x128xi32>
    %318 = arith.select %316, %0, %317 : vector<8x128xi1>, vector<8x128xi32>
    %cst_93 = arith.constant dense<2147483647> : vector<8xi32>
    %319 = vector.multi_reduction <minsi>, %318, %cst_93 [1] : vector<8x128xi32> to vector<8xi32>
    %320 = vector.shape_cast %319 : vector<8xi32> to vector<8x1xi32>
    %c7_i32_94 = arith.constant 7 : i32
    return
  }
  func.func @transform_0(%arg0: i32) -> (i32, i32, i32) {
    %c0_i32 = arith.constant 0 : i32
    %c0_i32_0 = arith.constant 0 : i32
    %c0_i32_1 = arith.constant 0 : i32
    return %c0_i32, %arg0, %c0_i32_0 : i32, i32, i32
  }
  func.func @transform_1(%arg0: i32) -> (i32, i32) {
    %c0_i32 = arith.constant 0 : i32
    %c0_i32_0 = arith.constant 0 : i32
    return %arg0, %c0_i32 : i32, i32
  }
}

</mosaic_0001>

<llo_original>
// kernel: tpu_custom_call.1
$region0: #{tpu_custom_call.1}
  #allocation0 [shape = 'u32[]', space=smem, size = 0x4, offset = 0x4, fixed_abs, tag = 'smem constant byte address 0x4 - core index']
  #allocation1 [shape = 'u32[144,128]{1,0:T(1,128)}', space=vmem, size = 0x12000, scoped, tag = 'internal scratch']
  #allocation2 [shape = 'f32[8,128]{1,0:T(8,128)}', space=vmem, size = 0x1000, scoped, tag = 'scratch operand']
  %s0 = inlined_call_operand.hbm [shape: f32[3,8,128], index: 0, kind: input, shape index: {}]
  %s1 = inlined_call_operand.hbm [shape: s32[8,8], index: 1, kind: output, shape index: {}]
  %s2 = sld [smem:[#allocation0]]
  $region18: #{tpu_custom_call.1} parent=0
    _
  %s4 = ssub.s32 1, %s2
  %s5 = scalar_select 0, %s4, %s2
  $region1: #{tpu_custom_call.1} parent=0
    #allocation3 [shape = 'u8[12288]{0}', space=vmem, size = 0x3000, scoped, tag = 'input window, operand 0, single buffered']
    #allocation4 [shape = 's32[1]{0}', space=sflag, size = 0x4, scoped, tag = 'scoped memory for tpu_custom_call.1']
    #allocation5 [shape = 's32[1]{0}', space=sflag, size = 0x4, scoped, tag = 'scoped memory for tpu_custom_call.1']
    #allocation6 [shape = 'u8[4096]{0}', space=vmem, size = 0x1000, scoped, tag = 'output window, operand 0, single buffered']
    %6 = vsyncpa [#allocation4], 0
    %7 = vsyncpa [#allocation5], 0
    // Predicated region
    $region2: #{tpu_custom_call.1} parent=1 // pred_check
      _
    $region3: #{tpu_custom_call.1} parent=1 // pred_check_branch
      %9 = sbr.rel (0) target = $region5
    $region4: #{tpu_custom_call.1} parent=1 // pred_region
      %s11 = ssub.s32 384, 384
      %12 = vsyncadd [#allocation4], %s11
      %s13 = sshll.u32 [#allocation3], 4
      %s14 = int_to_ptr.vmem [resolvable:$true] %s13
      %19 = dma.hbm_to_vmem [thread:$0]  %s0, 384, %s14, [#allocation4], 128, 128, 8
    $region5: #{tpu_custom_call.1} parent=1 // pred_fallthru
      _
    // Predicated region
    $region6: #{tpu_custom_call.1} parent=1 // pred_check
      _
    $region7: #{tpu_custom_call.1} parent=1 // pred_check_branch
      %21 = sbr.rel (0) target = $region9
    $region8: #{tpu_custom_call.1} parent=1 // pred_region
      %22 = dma.done [#allocation4], 384
    $region9: #{tpu_custom_call.1} parent=1 // pred_fallthru
      _
    %v23 = vlaneseq
    %v24 = vand.u32 %v23, 127
    %v25 = vld [vmem:[#allocation3] sm:$0xff]
    %s26 = scalar_lea.vmem [#allocation3], 8
    %v27 = vld [vmem:[%s26] sm:$0xff]
    %s28 = scalar_lea.vmem [#allocation3], 16
    %v29 = vld [vmem:[%s28] sm:$0xff]
    %vm30 = vcmask 7168
    %31 = vst.msk [vmem:[#allocation6] sm:$0xff] %vm30, 0
    %33 = vset.pattern.permute.xlu0 0
    %34 = vperm.xlu0 %33, %v25
    %v35 = vpop.permute.xlu0 %34
    %v37 = vsub.f32 %v25, %v35
    %v38 = vmul.f32 %v37, %v37
    %v39 = vadd.f32 %v38, 0.0
    %41 = vset.pattern.permute.xlu0 0
    %42 = vperm.xlu0 %41, %v27
    %v43 = vpop.permute.xlu0 %42
    %v45 = vsub.f32 %v27, %v43
    %v46 = vmul.f32 %v45, %v45
    %v47 = vadd.f32 %v39, %v46
    %49 = vset.pattern.permute.xlu0 0
    %50 = vperm.xlu0 %49, %v29
    %v51 = vpop.permute.xlu0 %50
    %v53 = vsub.f32 %v29, %v51
    %v54 = vmul.f32 %v53, %v53
    %v55 = vadd.f32 %v47, %v54
    %56 = vmax.xlane.f32.xlu0 %v55
    %v57 = vpop.xlane.xlu0 %56
    %vm58 = vcmp.eq.f32.partialorder %v55, %v57
    %v59 = vsel %vm58, %v24, 128
    %v60 = vand.u32 %v59, 65535
    %v61 = vshra.s32 %v59, 16
    %v62 = vcvt.s32.f32 %v60
    %v63 = vcvt.s32.f32 %v61
    %64 = vmin.xlane.f32.xlu0 %v63
    %v65 = vpop.xlane.xlu0 %64
    %vm66 = vcmp.eq.f32.partialorder %v63, %v65
    %v67 = vsel %vm66, %v62, inf
    %68 = vmin.xlane.f32.xlu0 %v67
    %v69 = vpop.xlane.xlu0 %68
    %v70 = vcvt.f32.s32 %v69
    %v71 = vcvt.f32.s32 %v65
    %v72 = vshll.u32 %v71, 16
    %v73 = vadd.s32 %v72, %v70
    %vm74 = vcmp.eq.s32.totalorder %v24, 1
    %vm75 = vcmask 64512
    %vm76 = vmand %vm75, %vm74
    %77 = vst.msk [vmem:[#allocation6] sm:$0xff] %vm76, %v73
    %vm78 = vcmp.eq.s32.totalorder %v24, %v73
    %v79 = vsel %vm78, %v25, 0.0
    %80 = vadd.xlane.f32.xlu0 %v79
    %v81 = vpop.xlane.xlu0 %80
    %v82 = vsub.f32 %v25, %v81
    %v83 = vmul.f32 %v82, %v82
    %v84 = vadd.f32 %v83, 0.0
    %v85 = vsel %vm78, %v27, 0.0
    %86 = vadd.xlane.f32.xlu0 %v85
    %v87 = vpop.xlane.xlu0 %86
    %v88 = vsub.f32 %v27, %v87
    %v89 = vmul.f32 %v88, %v88
    %v90 = vadd.f32 %v84, %v89
    %v91 = vsel %vm78, %v29, 0.0
    %92 = vadd.xlane.f32.xlu0 %v91
    %v93 = vpop.xlane.xlu0 %92
    %v94 = vsub.f32 %v29, %v93
    %v95 = vmul.f32 %v94, %v94
    %v96 = vadd.f32 %v90, %v95
    %v97 = vmin.f32 %v55, %v96
    %98 = vmax.xlane.f32.xlu0 %v97
    %v99 = vpop.xlane.xlu0 %98
    %vm100 = vcmp.eq.f32.partialorder %v97, %v99
    %v101 = vsel %vm100, %v24, 128
    %v102 = vand.u32 %v101, 65535
    %v103 = vshra.s32 %v101, 16
    %v104 = vcvt.s32.f32 %v102
    %v105 = vcvt.s32.f32 %v103
    %106 = vmin.xlane.f32.xlu0 %v105
    %v107 = vpop.xlane.xlu0 %106
    %vm108 = vcmp.eq.f32.partialorder %v105, %v107
    %v109 = vsel %vm108, %v104, inf
    %110 = vmin.xlane.f32.xlu0 %v109
    %v111 = vpop.xlane.xlu0 %110
    %v112 = vcvt.f32.s32 %v111
    %v113 = vcvt.f32.s32 %v107
    %v114 = vshll.u32 %v113, 16
    %v115 = vadd.s32 %v114, %v112
    %vm116 = vcmp.eq.s32.totalorder %v24, 2
    %vm117 = vmand %vm75, %vm116
    %118 = vst.msk [vmem:[#allocation6] sm:$0xff] %vm117, %v115
    %vm119 = vcmp.eq.s32.totalorder %v24, %v115
    %v120 = vsel %vm119, %v25, 0.0
    %121 = vadd.xlane.f32.xlu0 %v120
    %v122 = vpop.xlane.xlu0 %121
    %v123 = vsub.f32 %v25, %v122
    %v124 = vmul.f32 %v123, %v123
    %v125 = vadd.f32 %v124, 0.0
    %v126 = vsel %vm119, %v27, 0.0
    %127 = vadd.xlane.f32.xlu0 %v126
    %v128 = vpop.xlane.xlu0 %127
    %v129 = vsub.f32 %v27, %v128
    %v130 = vmul.f32 %v129, %v129
    %v131 = vadd.f32 %v125, %v130
    %v132 = vsel %vm119, %v29, 0.0
    %133 = vadd.xlane.f32.xlu0 %v132
    %v134 = vpop.xlane.xlu0 %133
    %v135 = vsub.f32 %v29, %v134
    %v136 = vmul.f32 %v135, %v135
    %v137 = vadd.f32 %v131, %v136
    %v138 = vmin.f32 %v97, %v137
    %139 = vmax.xlane.f32.xlu0 %v138
    %v140 = vpop.xlane.xlu0 %139
    %vm141 = vcmp.eq.f32.partialorder %v138, %v140
    %v142 = vsel %vm141, %v24, 128
    %v143 = vand.u32 %v142, 65535
    %v144 = vshra.s32 %v142, 16
    %v145 = vcvt.s32.f32 %v143
    %v146 = vcvt.s32.f32 %v144
    %147 = vmin.xlane.f32.xlu0 %v146
    %v148 = vpop.xlane.xlu0 %147
    %vm149 = vcmp.eq.f32.partialorder %v146, %v148
    %v150 = vsel %vm149, %v145, inf
    %151 = vmin.xlane.f32.xlu0 %v150
    %v152 = vpop.xlane.xlu0 %151
    %v153 = vcvt.f32.s32 %v152
    %v154 = vcvt.f32.s32 %v148
    %v155 = vshll.u32 %v154, 16
    %v156 = vadd.s32 %v155, %v153
    %vm157 = vcmp.eq.s32.totalorder %v24, 3
    %vm158 = vmand %vm75, %vm157
    %159 = vst.msk [vmem:[#allocation6] sm:$0xff] %vm158, %v156
    %vm160 = vcmp.eq.s32.totalorder %v24, %v156
    %v161 = vsel %vm160, %v25, 0.0
    %162 = vadd.xlane.f32.xlu0 %v161
    %v163 = vpop.xlane.xlu0 %162
    %v164 = vsub.f32 %v25, %v163
    %v165 = vmul.f32 %v164, %v164
    %v166 = vadd.f32 %v165, 0.0
    %v167 = vsel %vm160, %v27, 0.0
    %168 = vadd.xlane.f32.xlu0 %v167
    %v169 = vpop.xlane.xlu0 %168
    %v170 = vsub.f32 %v27, %v169
    %v171 = vmul.f32 %v170, %v170
    %v172 = vadd.f32 %v166, %v171
    %v173 = vsel %vm160, %v29, 0.0
    %174 = vadd.xlane.f32.xlu0 %v173
    %v175 = vpop.xlane.xlu0 %174
    %v176 = vsub.f32 %v29, %v175
    %v177 = vmul.f32 %v176, %v176
    %v178 = vadd.f32 %v172, %v177
    %v179 = vmin.f32 %v138, %v178
    %180 = vmax.xlane.f32.xlu0 %v179
    %v181 = vpop.xlane.xlu0 %180
    %vm182 = vcmp.eq.f32.partialorder %v179, %v181
    %v183 = vsel %vm182, %v24, 128
    %v184 = vand.u32 %v183, 65535
    %v185 = vshra.s32 %v183, 16
    %v186 = vcvt.s32.f32 %v184
    %v187 = vcvt.s32.f32 %v185
    %188 = vmin.xlane.f32.xlu0 %v187
    %v189 = vpop.xlane.xlu0 %188
    %vm190 = vcmp.eq.f32.partialorder %v187, %v189
    %v191 = vsel %vm190, %v186, inf
    %192 = vmin.xlane.f32.xlu0 %v191
    %v193 = vpop.xlane.xlu0 %192
    %v194 = vcvt.f32.s32 %v193
    %v195 = vcvt.f32.s32 %v189
    %v196 = vshll.u32 %v195, 16
    %v197 = vadd.s32 %v196, %v194
    %vm198 = vcmp.eq.s32.totalorder %v24, 4
    %vm199 = vmand %vm75, %vm198
    %200 = vst.msk [vmem:[#allocation6] sm:$0xff] %vm199, %v197
    %vm201 = vcmp.eq.s32.totalorder %v24, %v197
    %v202 = vsel %vm201, %v25, 0.0
    %203 = vadd.xlane.f32.xlu0 %v202
    %v204 = vpop.xlane.xlu0 %203
    %v205 = vsub.f32 %v25, %v204
    %v206 = vmul.f32 %v205, %v205
    %v207 = vadd.f32 %v206, 0.0
    %v208 = vsel %vm201, %v27, 0.0
    %209 = vadd.xlane.f32.xlu0 %v208
    %v210 = vpop.xlane.xlu0 %209
    %v211 = vsub.f32 %v27, %v210
    %v212 = vmul.f32 %v211, %v211
    %v213 = vadd.f32 %v207, %v212
    %v214 = vsel %vm201, %v29, 0.0
    %215 = vadd.xlane.f32.xlu0 %v214
    %v216 = vpop.xlane.xlu0 %215
    %v217 = vsub.f32 %v29, %v216
    %v218 = vmul.f32 %v217, %v217
    %v219 = vadd.f32 %v213, %v218
    %v220 = vmin.f32 %v179, %v219
    %221 = vmax.xlane.f32.xlu0 %v220
    %v222 = vpop.xlane.xlu0 %221
    %vm223 = vcmp.eq.f32.partialorder %v220, %v222
    %v224 = vsel %vm223, %v24, 128
    %v225 = vand.u32 %v224, 65535
    %v226 = vshra.s32 %v224, 16
    %v227 = vcvt.s32.f32 %v225
    %v228 = vcvt.s32.f32 %v226
    %229 = vmin.xlane.f32.xlu0 %v228
    %v230 = vpop.xlane.xlu0 %229
    %vm231 = vcmp.eq.f32.partialorder %v228, %v230
    %v232 = vsel %vm231, %v227, inf
    %233 = vmin.xlane.f32.xlu0 %v232
    %v234 = vpop.xlane.xlu0 %233
    %v235 = vcvt.f32.s32 %v234
    %v236 = vcvt.f32.s32 %v230
    %v237 = vshll.u32 %v236, 16
    %v238 = vadd.s32 %v237, %v235
    %vm239 = vcmp.eq.s32.totalorder %v24, 5
    %vm240 = vmand %vm75, %vm239
    %241 = vst.msk [vmem:[#allocation6] sm:$0xff] %vm240, %v238
    %vm242 = vcmp.eq.s32.totalorder %v24, %v238
    %v243 = vsel %vm242, %v25, 0.0
    %244 = vadd.xlane.f32.xlu0 %v243
    %v245 = vpop.xlane.xlu0 %244
    %v246 = vsub.f32 %v25, %v245
    %v247 = vmul.f32 %v246, %v246
    %v248 = vadd.f32 %v247, 0.0
    %v249 = vsel %vm242, %v27, 0.0
    %250 = vadd.xlane.f32.xlu0 %v249
    %v251 = vpop.xlane.xlu0 %250
    %v252 = vsub.f32 %v27, %v251
    %v253 = vmul.f32 %v252, %v252
    %v254 = vadd.f32 %v248, %v253
    %v255 = vsel %vm242, %v29, 0.0
    %256 = vadd.xlane.f32.xlu0 %v255
    %v257 = vpop.xlane.xlu0 %256
    %v258 = vsub.f32 %v29, %v257
    %v259 = vmul.f32 %v258, %v258
    %v260 = vadd.f32 %v254, %v259
    %v261 = vmin.f32 %v220, %v260
    %262 = vmax.xlane.f32.xlu0 %v261
    %v263 = vpop.xlane.xlu0 %262
    %vm264 = vcmp.eq.f32.partialorder %v261, %v263
    %v265 = vsel %vm264, %v24, 128
    %v266 = vand.u32 %v265, 65535
    %v267 = vshra.s32 %v265, 16
    %v268 = vcvt.s32.f32 %v266
    %v269 = vcvt.s32.f32 %v267
    %270 = vmin.xlane.f32.xlu0 %v269
    %v271 = vpop.xlane.xlu0 %270
    %vm272 = vcmp.eq.f32.partialorder %v269, %v271
    %v273 = vsel %vm272, %v268, inf
    %274 = vmin.xlane.f32.xlu0 %v273
    %v275 = vpop.xlane.xlu0 %274
    %v276 = vcvt.f32.s32 %v275
    %v277 = vcvt.f32.s32 %v271
    %v278 = vshll.u32 %v277, 16
    %v279 = vadd.s32 %v278, %v276
    %vm280 = vcmp.eq.s32.totalorder %v24, 6
    %vm281 = vmand %vm75, %vm280
    %282 = vst.msk [vmem:[#allocation6] sm:$0xff] %vm281, %v279
    %vm283 = vcmp.eq.s32.totalorder %v24, %v279
    %v284 = vsel %vm283, %v25, 0.0
    %285 = vadd.xlane.f32.xlu0 %v284
    %v286 = vpop.xlane.xlu0 %285
    %v287 = vsub.f32 %v25, %v286
    %v288 = vmul.f32 %v287, %v287
    %v289 = vadd.f32 %v288, 0.0
    %v290 = vsel %vm283, %v27, 0.0
    %291 = vadd.xlane.f32.xlu0 %v290
    %v292 = vpop.xlane.xlu0 %291
    %v293 = vsub.f32 %v27, %v292
    %v294 = vmul.f32 %v293, %v293
    %v295 = vadd.f32 %v289, %v294
    %v296 = vsel %vm283, %v29, 0.0
    %297 = vadd.xlane.f32.xlu0 %v296
    %v298 = vpop.xlane.xlu0 %297
    %v299 = vsub.f32 %v29, %v298
    %v300 = vmul.f32 %v299, %v299
    %v301 = vadd.f32 %v295, %v300
    %v302 = vmin.f32 %v261, %v301
    %303 = vmax.xlane.f32.xlu0 %v302
    %v304 = vpop.xlane.xlu0 %303
    %vm305 = vcmp.eq.f32.partialorder %v302, %v304
    %v306 = vsel %vm305, %v24, 128
    %v307 = vand.u32 %v306, 65535
    %v308 = vshra.s32 %v306, 16
    %v309 = vcvt.s32.f32 %v307
    %v310 = vcvt.s32.f32 %v308
    %311 = vmin.xlane.f32.xlu0 %v310
    %v312 = vpop.xlane.xlu0 %311
    %vm313 = vcmp.eq.f32.partialorder %v310, %v312
    %v314 = vsel %vm313, %v309, inf
    %315 = vmin.xlane.f32.xlu0 %v314
    %v316 = vpop.xlane.xlu0 %315
    %v317 = vcvt.f32.s32 %v316
    %v318 = vcvt.f32.s32 %v312
    %v319 = vshll.u32 %v318, 16
    %v320 = vadd.s32 %v319, %v317
    %vm321 = vcmp.eq.s32.totalorder %v24, 7
    %vm322 = vmand %vm75, %vm321
    %323 = vst.msk [vmem:[#allocation6] sm:$0xff] %vm322, %v320
    // Predicated region
    $region10: #{tpu_custom_call.1} parent=1 // pred_check
      _
    $region11: #{tpu_custom_call.1} parent=1 // pred_check_branch
      %325 = sbr.rel (0) target = $region13
    $region12: #{tpu_custom_call.1} parent=1 // pred_region
      %s327 = ssub.s32 128, 128
      %328 = vsyncadd [#allocation5], %s327
      %s330 = sshll.u32 [#allocation6], 4
      %s331 = int_to_ptr.vmem [resolvable:$true] %s330
      %333 = dma.vmem_to_hbm [thread:$0]  %s331, 128, %s1, [#allocation5]
    $region13: #{tpu_custom_call.1} parent=1 // pred_fallthru
      _
    // Predicated region
    $region14: #{tpu_custom_call.1} parent=1 // pred_check
      _
    $region15: #{tpu_custom_call.1} parent=1 // pred_check_branch
      %335 = sbr.rel (0) target = $region17
    $region16: #{tpu_custom_call.1} parent=1 // pred_region
      %336 = dma.done [#allocation5], 128
    $region17: #{tpu_custom_call.1} parent=1 // pred_fallthru
      _
    %337 = vsyncpa [#allocation4], 1
    %338 = vsyncpa [#allocation5], 1

</llo_original>
